<compile_context>
chip_gen: v6e
topology: v6e:2x2x1
jax: 0.10.0
libtpu: 0.0.40
codegen_flags: <defaults>
</compile_context>

<pallas_src>
import jax
import jax.numpy as jnp
from jax.experimental import pallas as pl
from jax.experimental.pallas import tpu as pltpu

OUT_PAD = 128  # lane-dense final-layer width; true logits are the first 10 cols


def _round_up(n, m):
    return ((n + m - 1) // m) * m


def mlp_kernel(x_ref, w1_ref, b1_ref, w2_ref, b2_ref, w3_ref, b3_ref, o_ref):
    # One batch tile per grid step; whole MLP fused (everything fits in VMEM).
    x = x_ref[...]  # (TILE_B, D) bf16

    # fc1 + ReLU : bf16 matmul on the MXU, f32 accumulate, f32 elementwise.
    h1 = jnp.dot(x, w1_ref[...], preferred_element_type=jnp.float32)
    h1 = jnp.maximum(h1 + b1_ref[...], 0.0)

    # fc2 + ReLU : cast activations to bf16 only for the dot operands.
    h2 = jnp.dot(h1.astype(jnp.bfloat16), w2_ref[...],
                 preferred_element_type=jnp.float32)
    h2 = jnp.maximum(h2 + b2_ref[...], 0.0)

    # fc3 (lane-padded to OUT_PAD columns -> unmasked 128-lane stores).
    h3 = jnp.dot(h2.astype(jnp.bfloat16), w3_ref[...],
                 preferred_element_type=jnp.float32)
    o_ref[...] = (h3 + b3_ref[...]).astype(o_ref.dtype)


def classifier_forward(x, params, *, tile_b=1024):
    """x: (B, D) float32. params: dict of w1,b1,w2,b2,w3,b3 (see make_params).

    Returns (B, 10) float32 logits, matching Classifier.forward(x, training).
    """
    B, D = x.shape
    H1 = params["w1"].shape[1]
    H2 = params["w2"].shape[1]
    C = params["w3"].shape[1]  # 10 real output classes

    # ---- operand prep (plain XLA ops in the wrapper) ------------------------
    x_bf = x.astype(jnp.bfloat16)  # halves HBM bytes for the only B-scaled input
    w1 = params["w1"].astype(jnp.bfloat16)
    w2 = params["w2"].astype(jnp.bfloat16)
    w3 = jnp.zeros((H2, OUT_PAD), jnp.bfloat16).at[:, :C].set(
        params["w3"].astype(jnp.bfloat16))
    b1 = params["b1"].astype(jnp.float32)
    b2 = params["b2"].astype(jnp.float32)
    b3 = jnp.zeros((1, OUT_PAD), jnp.float32).at[:, :C].set(
        params["b3"].astype(jnp.float32))

    # ---- batch tiling (TILE_B multiple of 8; pad B up to a tile multiple) ---
    tile_b = _round_up(max(8, min(tile_b, _round_up(B, 8))), 8)
    b_pad = _round_up(B, tile_b)
    if b_pad != B:
        x_bf = jnp.pad(x_bf, ((0, b_pad - B), (0, 0)))
    grid = (b_pad // tile_b,)

    # Constant-index blocks: weights/biases stay VMEM-resident across the grid.
    def const(shape):
        return pl.BlockSpec(shape, lambda i: (0, 0))

    flops = 2 * b_pad * (D * H1 + H1 * H2 + H2 * OUT_PAD)
    bytes_accessed = (b_pad * D * 2 + b_pad * OUT_PAD * 4
                      + (w1.size + w2.size + w3.size) * 2
                      + (b1.size + b2.size + b3.size) * 4)

    out = pl.pallas_call(
        mlp_kernel,
        out_shape=jax.ShapeDtypeStruct((b_pad, OUT_PAD), jnp.float32),
        grid=grid,
        in_specs=[
            pl.BlockSpec((tile_b, D), lambda i: (i, 0)),  # x: streamed per tile
            const((D, H1)), const((1, H1)),               # fc1 (resident)
            const((H1, H2)), const((1, H2)),              # fc2 (resident)
            const((H2, OUT_PAD)), const((1, OUT_PAD)),    # fc3 (lane-padded)
        ],
        out_specs=pl.BlockSpec((tile_b, OUT_PAD), lambda i: (i, 0)),
        compiler_params=pltpu.CompilerParams(
            dimension_semantics=("parallel",)),           # 2 TCs on v7x
        cost_estimate=pl.CostEstimate(
            flops=flops, transcendentals=0, bytes_accessed=bytes_accessed),
    )(x_bf, w1, b1, w2, b2, w3, b3)

    return out[:B, :C]


def make_params(key, input_dim):
    # Deterministic synthetic init (matches nn.Linear shapes, stored transposed).
    ks = jax.random.split(key, 6)

    def lin(kw, kb, din, dout):
        w = jax.random.normal(kw, (din, dout), jnp.float32) * (1.0 / jnp.sqrt(din))
        b = jax.random.normal(kb, (1, dout), jnp.float32) * 0.01
        return w, b

    w1, b1 = lin(ks[0], ks[1], input_dim, 64)
    w2, b2 = lin(ks[2], ks[3], 64, 32)
    w3, b3 = lin(ks[4], ks[5], 32, 10)
    return {"w1": w1, "b1": b1, "w2": w2, "b2": b2, "w3": w3, "b3": b3}


def reference_forward_f32(x, p):
    h = jnp.maximum(x @ p["w1"] + p["b1"], 0.0)
    h = jnp.maximum(h @ p["w2"] + p["b2"], 0.0)
    return h @ p["w3"] + p["b3"]


def reference_forward_bf16(x, p):
    # Same bf16-operand / f32-accumulate recipe as the kernel.
    bf = jnp.bfloat16
    h = jnp.dot(x.astype(bf), p["w1"].astype(bf),
                preferred_element_type=jnp.float32) + p["b1"]
    h = jnp.maximum(h, 0.0)
    h = jnp.dot(h.astype(bf), p["w2"].astype(bf),
                preferred_element_type=jnp.float32) + p["b2"]
    h = jnp.maximum(h, 0.0)
    return jnp.dot(h.astype(bf), p["w3"].astype(bf),
                   preferred_element_type=jnp.float32) + p["b3"]


if __name__ == "__main__":
    key = jax.random.PRNGKey(0)
    k_x, k_x2, k_p = jax.random.split(key, 3)

    input_dim = 32
    params = make_params(k_p, input_dim)

    # Small-shape check (single tile, matches the PyTorch module's contract).
    x = jax.random.normal(k_x, (8, input_dim), jnp.float32)
    out = jax.block_until_ready(classifier_forward(x, params))
    assert out.shape == (8, 10)
    assert jnp.allclose(out, reference_forward_bf16(x, params), atol=2e-3, rtol=2e-3)
    assert jnp.allclose(out, reference_forward_f32(x, params), atol=5e-2, rtol=5e-2)

    # Multi-tile check with a ragged batch (exercises grid + batch padding path).
    x2 = jax.random.normal(k_x2, (1000, input_dim), jnp.float32)
    out2 = jax.block_until_ready(classifier_forward(x2, params, tile_b=256))
    assert out2.shape == (1000, 10)
    assert jnp.allclose(out2, reference_forward_bf16(x2, params), atol=2e-3, rtol=2e-3)

    print("KERNEL_OK")
</pallas_src>

<mosaic_0001>
module attributes {stable_mosaic.version = 11 : i64} {
  func.func @mlp_kernel(%arg0: i32, %arg1: memref<8x32xbf16, #tpu.memory_space<vmem>>, %arg2: memref<32x64xbf16, #tpu.memory_space<vmem>>, %arg3: memref<1x64xf32, #tpu.memory_space<vmem>>, %arg4: memref<64x32xbf16, #tpu.memory_space<vmem>>, %arg5: memref<1x32xf32, #tpu.memory_space<vmem>>, %arg6: memref<32x128xbf16, #tpu.memory_space<vmem>>, %arg7: memref<1x128xf32, #tpu.memory_space<vmem>>, %arg8: memref<8x128xf32, #tpu.memory_space<vmem>>) attributes {dimension_semantics = [#tpu.dimension_semantics<parallel>], iteration_bounds = array<i64: 1>, scalar_prefetch = 0 : i64, scratch_operands = 0 : i64, tpu.core_type = #tpu.core_type<tc>, window_params = [{transform_indices = @transform_0, window_bounds = array<i64: 8, 32>}, {pipeline_mode = #tpu.pipeline_mode<synchronous>, transform_indices = @transform_1, window_bounds = array<i64: 32, 64>}, {pipeline_mode = #tpu.pipeline_mode<synchronous>, transform_indices = @transform_2, window_bounds = array<i64: 1, 64>}, {pipeline_mode = #tpu.pipeline_mode<synchronous>, transform_indices = @transform_3, window_bounds = array<i64: 64, 32>}, {pipeline_mode = #tpu.pipeline_mode<synchronous>, transform_indices = @transform_4, window_bounds = array<i64: 1, 32>}, {pipeline_mode = #tpu.pipeline_mode<synchronous>, transform_indices = @transform_5, window_bounds = array<i64: 32, 128>}, {pipeline_mode = #tpu.pipeline_mode<synchronous>, transform_indices = @transform_6, window_bounds = array<i64: 1, 128>}, {transform_indices = @transform_7, window_bounds = array<i64: 8, 128>}]} {
    %c0 = arith.constant 0 : index
    %c0_0 = arith.constant 0 : index
    %0 = vector.load %arg1[%c0, %c0_0] : memref<8x32xbf16, #tpu.memory_space<vmem>>, vector<8x32xbf16>
    %c0_1 = arith.constant 0 : index
    %c0_2 = arith.constant 0 : index
    %1 = vector.load %arg2[%c0_1, %c0_2] : memref<32x64xbf16, #tpu.memory_space<vmem>>, vector<32x64xbf16>
    %cst = arith.constant dense<0.000000e+00> : vector<8x64xf32>
    %2 = tpu.matmul %0, %1, %cst {dimension_numbers = #tpu.dot_dimension_numbers<[1], [0], [0], [1], [0, 0, 1, 1], [], []>} : vector<8x32xbf16>, vector<32x64xbf16>, vector<8x64xf32> -> vector<8x64xf32>
    %c0_3 = arith.constant 0 : index
    %c0_4 = arith.constant 0 : index
    %3 = vector.load %arg3[%c0_3, %c0_4] : memref<1x64xf32, #tpu.memory_space<vmem>>, vector<1x64xf32>
    %4 = vector.broadcast %3 : vector<1x64xf32> to vector<8x64xf32>
    %5 = arith.addf %2, %4 : vector<8x64xf32>
    %cst_5 = arith.constant 0.000000e+00 : f32
    %6 = vector.broadcast %cst_5 : f32 to vector<8x64xf32>
    %7 = arith.maximumf %5, %6 : vector<8x64xf32>
    %8 = arith.truncf %7 : vector<8x64xf32> to vector<8x64xbf16>
    %c0_6 = arith.constant 0 : index
    %c0_7 = arith.constant 0 : index
    %9 = vector.load %arg4[%c0_6, %c0_7] : memref<64x32xbf16, #tpu.memory_space<vmem>>, vector<64x32xbf16>
    %cst_8 = arith.constant dense<0.000000e+00> : vector<8x32xf32>
    %10 = tpu.matmul %8, %9, %cst_8 {dimension_numbers = #tpu.dot_dimension_numbers<[1], [0], [0], [1], [0, 0, 1, 1], [], []>} : vector<8x64xbf16>, vector<64x32xbf16>, vector<8x32xf32> -> vector<8x32xf32>
    %c0_9 = arith.constant 0 : index
    %c0_10 = arith.constant 0 : index
    %11 = vector.load %arg5[%c0_9, %c0_10] : memref<1x32xf32, #tpu.memory_space<vmem>>, vector<1x32xf32>
    %12 = vector.broadcast %11 : vector<1x32xf32> to vector<8x32xf32>
    %13 = arith.addf %10, %12 : vector<8x32xf32>
    %cst_11 = arith.constant 0.000000e+00 : f32
    %14 = vector.broadcast %cst_11 : f32 to vector<8x32xf32>
    %15 = arith.maximumf %13, %14 : vector<8x32xf32>
    %16 = arith.truncf %15 : vector<8x32xf32> to vector<8x32xbf16>
    %c0_12 = arith.constant 0 : index
    %c0_13 = arith.constant 0 : index
    %17 = vector.load %arg6[%c0_12, %c0_13] : memref<32x128xbf16, #tpu.memory_space<vmem>>, vector<32x128xbf16>
    %cst_14 = arith.constant dense<0.000000e+00> : vector<8x128xf32>
    %18 = tpu.matmul %16, %17, %cst_14 {dimension_numbers = #tpu.dot_dimension_numbers<[1], [0], [0], [1], [0, 0, 1, 1], [], []>} : vector<8x32xbf16>, vector<32x128xbf16>, vector<8x128xf32> -> vector<8x128xf32>
    %c0_15 = arith.constant 0 : index
    %c0_16 = arith.constant 0 : index
    %19 = vector.load %arg7[%c0_15, %c0_16] : memref<1x128xf32, #tpu.memory_space<vmem>>, vector<1x128xf32>
    %20 = vector.broadcast %19 : vector<1x128xf32> to vector<8x128xf32>
    %21 = arith.addf %18, %20 : vector<8x128xf32>
    %c0_17 = arith.constant 0 : index
    %c0_18 = arith.constant 0 : index
    %22 = vector.load %arg8[%c0_17, %c0_18] : memref<8x128xf32, #tpu.memory_space<vmem>>, vector<8x128xf32>
    tpu.vector_store %arg8[%c0_17, %c0_18], %21 {strides = array<i32>} : memref<8x128xf32, #tpu.memory_space<vmem>>, vector<8x128xf32>,
    return
  }
  func.func @transform_0(%arg0: i32) -> (i32, i32) {
    %c0_i32 = arith.constant 0 : i32
    %c0_i32_0 = arith.constant 0 : i32
    return %arg0, %c0_i32 : i32, i32
  }
  func.func @transform_1(%arg0: i32) -> (i32, i32) {
    %c0_i32 = arith.constant 0 : i32
    %c0_i32_0 = arith.constant 0 : i32
    %c0_i32_1 = arith.constant 0 : i32
    return %c0_i32, %c0_i32_0 : i32, i32
  }
  func.func @transform_2(%arg0: i32) -> (i32, i32) {
    %c0_i32 = arith.constant 0 : i32
    %c0_i32_0 = arith.constant 0 : i32
    %c0_i32_1 = arith.constant 0 : i32
    return %c0_i32, %c0_i32_0 : i32, i32
  }
  func.func @transform_3(%arg0: i32) -> (i32, i32) {
    %c0_i32 = arith.constant 0 : i32
    %c0_i32_0 = arith.constant 0 : i32
    %c0_i32_1 = arith.constant 0 : i32
    return %c0_i32, %c0_i32_0 : i32, i32
  }
  func.func @transform_4(%arg0: i32) -> (i32, i32) {
    %c0_i32 = arith.constant 0 : i32
    %c0_i32_0 = arith.constant 0 : i32
    %c0_i32_1 = arith.constant 0 : i32
    return %c0_i32, %c0_i32_0 : i32, i32
  }
  func.func @transform_5(%arg0: i32) -> (i32, i32) {
    %c0_i32 = arith.constant 0 : i32
    %c0_i32_0 = arith.constant 0 : i32
    %c0_i32_1 = arith.constant 0 : i32
    return %c0_i32, %c0_i32_0 : i32, i32
  }
  func.func @transform_6(%arg0: i32) -> (i32, i32) {
    %c0_i32 = arith.constant 0 : i32
    %c0_i32_0 = arith.constant 0 : i32
    %c0_i32_1 = arith.constant 0 : i32
    return %c0_i32, %c0_i32_0 : i32, i32
  }
  func.func @transform_7(%arg0: i32) -> (i32, i32) {
    %c0_i32 = arith.constant 0 : i32
    %c0_i32_0 = arith.constant 0 : i32
    return %arg0, %c0_i32 : i32, i32
  }
}

</mosaic_0001>

<llo_original>
// kernel: tpu_custom_call.1
$region0: #{tpu_custom_call.1}
  #allocation0 [shape = 'u32[]', space=smem, size = 0x4, offset = 0x4, fixed_abs, tag = 'smem constant byte address 0x4 - core index']
  #allocation1 [shape = 'u32[144,128]{1,0:T(1,128)}', space=vmem, size = 0x12000, scoped, tag = 'internal scratch']
  %s0 = inlined_call_operand.vmem [shape: bf16[8,32], index: 0, kind: input, shape index: {}]
  %s1 = inlined_call_operand.vmem [shape: bf16[32,64], index: 1, kind: input, shape index: {}]
  %s2 = inlined_call_operand.vmem [shape: f32[1,64], index: 2, kind: input, shape index: {}]
  %s3 = inlined_call_operand.vmem [shape: bf16[64,32], index: 3, kind: input, shape index: {}]
  %s4 = inlined_call_operand.vmem [shape: f32[1,32], index: 4, kind: input, shape index: {}]
  %s5 = inlined_call_operand.vmem [shape: bf16[32,128], index: 5, kind: input, shape index: {}]
  %s6 = inlined_call_operand.vmem [shape: f32[1,128], index: 6, kind: input, shape index: {}]
  %s7 = inlined_call_operand.hbm [shape: f32[8,128], index: 7, kind: output, shape index: {}]
  %s8 = sld [smem:[#allocation0]]
  $region38: #{tpu_custom_call.1} parent=0
    _
  %s10 = ssub.s32 1, %s8
  %s11 = scalar_select 0, %s10, %s8
  $region1: #{tpu_custom_call.1} parent=0
    #allocation2 [shape = 'u8[4096]{0}', space=vmem, size = 0x1000, scoped, tag = 'output window, operand 0, single buffered']
    #allocation3 [shape = 's32[1]{0}', space=sflag, size = 0x4, scoped, tag = 'scoped memory for tpu_custom_call.1']
    %12 = vsyncpa [#allocation3], 0
    // Predicated region
    $region2: #{tpu_custom_call.1} parent=1 // pred_check
      _
    $region3: #{tpu_custom_call.1} parent=1 // pred_check_branch
      %14 = sbr.rel (0) target = $region5
    $region4: #{tpu_custom_call.1} parent=1 // pred_region
      _
    $region5: #{tpu_custom_call.1} parent=1 // pred_fallthru
      _
    // Predicated region
    $region6: #{tpu_custom_call.1} parent=1 // pred_check
      _
    $region7: #{tpu_custom_call.1} parent=1 // pred_check_branch
      %16 = sbr.rel (0) target = $region9
    $region8: #{tpu_custom_call.1} parent=1 // pred_region
      _
    $region9: #{tpu_custom_call.1} parent=1 // pred_fallthru
      _
    // Predicated region
    $region10: #{tpu_custom_call.1} parent=1 // pred_check
      _
    $region11: #{tpu_custom_call.1} parent=1 // pred_check_branch
      %18 = sbr.rel (0) target = $region13
    $region12: #{tpu_custom_call.1} parent=1 // pred_region
      _
    $region13: #{tpu_custom_call.1} parent=1 // pred_fallthru
      _
    // Predicated region
    $region14: #{tpu_custom_call.1} parent=1 // pred_check
      _
    $region15: #{tpu_custom_call.1} parent=1 // pred_check_branch
      %20 = sbr.rel (0) target = $region17
    $region16: #{tpu_custom_call.1} parent=1 // pred_region
      _
    $region17: #{tpu_custom_call.1} parent=1 // pred_fallthru
      _
    // Predicated region
    $region18: #{tpu_custom_call.1} parent=1 // pred_check
      _
    $region19: #{tpu_custom_call.1} parent=1 // pred_check_branch
      %22 = sbr.rel (0) target = $region21
    $region20: #{tpu_custom_call.1} parent=1 // pred_region
      _
    $region21: #{tpu_custom_call.1} parent=1 // pred_fallthru
      _
    // Predicated region
    $region22: #{tpu_custom_call.1} parent=1 // pred_check
      _
    $region23: #{tpu_custom_call.1} parent=1 // pred_check_branch
      %24 = sbr.rel (0) target = $region25
    $region24: #{tpu_custom_call.1} parent=1 // pred_region
      _
    $region25: #{tpu_custom_call.1} parent=1 // pred_fallthru
      _
    // Predicated region
    $region26: #{tpu_custom_call.1} parent=1 // pred_check
      _
    $region27: #{tpu_custom_call.1} parent=1 // pred_check_branch
      %26 = sbr.rel (0) target = $region29
    $region28: #{tpu_custom_call.1} parent=1 // pred_region
      _
    $region29: #{tpu_custom_call.1} parent=1 // pred_fallthru
      _
    %v28 = vld [vmem:[%s0] sm:$0xf]
    %v29 = vld [vmem:[%s1] sm:$0xf]
    %v30 = vld [vmem:[%s1 + $0x4] sm:$0xf]
    %v31 = vld [vmem:[%s1 + $0x8] sm:$0xf]
    %v32 = vld [vmem:[%s1 + $0xc] sm:$0xf]
    %v33 = vld [vmem:[%s2] sm:$0x1]
    %v35 = vlaneseq
    %v36 = vshrl.u32 %v35, 7
    %v37 = vsub.s32 0, %v36
    %v38 = vrot.slane %v33, %v37
    %v44 = vunpack.c.l.b16 %v29
    %v45 = vunpack.c.l.b16 %v30
    %v46 = vunpack.c.l.b16 %v31
    %v47 = vunpack.c.l.b16 %v32
    %v48 = vpack.c.b16 %v45, %v44
    %v49 = vpack.c.b16 %v47, %v46
    %vm52 = vcmask 261120
    %v54 = vsel %vm52, %v28, 0
    %56 = vmatprep.subr.bf16.mxu0 0
    %57 = vmatpush1.bf16.msra.mxu0 0
    %58 = vmatprep.subr.bf16.mxu0 0
    %59 = vmatpush1.bf16.msra.mxu0 0
    %60 = vmatprep.subr.bf16.mxu0 0
    %61 = vmatpush1.bf16.msra.mxu0 0
    %62 = vmatprep.subr.bf16.mxu0 0
    %63 = vmatpush1.bf16.msra.mxu0 0
    %64 = vmatprep.subr.bf16.mxu0 0
    %65 = vmatpush1.bf16.msra.mxu0 0
    %66 = vmatprep.subr.bf16.mxu0 0
    %67 = vmatpush1.bf16.msra.mxu0 0
    %68 = vmatprep.subr.bf16.mxu0 0
    %69 = vmatpush1.bf16.msra.mxu0 %v49
    %70 = vmatprep.subr.bf16.mxu0 0
    %71 = vmatpush1.bf16.msra.mxu0 %v48
    %72 = vmatprep.subr.bf16.mxu0 0
    %73 = vmatpush2.bf16.msra.mxu0 0
    %74 = vmatprep.subr.bf16.mxu0 0
    %75 = vmatpush2.bf16.msra.mxu0 0
    %76 = vmatprep.subr.bf16.mxu0 0
    %77 = vmatpush2.bf16.msra.mxu0 0
    %78 = vmatprep.subr.bf16.mxu0 0
    %79 = vmatpush2.bf16.msra.mxu0 0
    %80 = vmatprep.subr.bf16.mxu0 0
    %81 = vmatpush2.bf16.msra.mxu0 0
    %82 = vmatprep.subr.bf16.mxu0 0
    %83 = vmatpush2.bf16.msra.mxu0 0
    %84 = vmatprep.subr.bf16.mxu0 0
    %85 = vmatpush2.bf16.msra.mxu0 0
    %86 = vmatprep.subr.bf16.mxu0 0
    %87 = vmatpush2.bf16.msra.mxu0 0
    %88 = vmatprep.mubr.bf16.mxu0 0
    %89 = vmatmul.mubr.bf16.gmra.mxu0 %v54
    %v90 = vpop.f32.mrf.mxu0
    %v91 = vadd.f32 %v38, %v90
    %v92 = vpop.f32.mrf.mxu0
    %v93 = vpop.f32.mrf.mxu0
    %v94 = vpop.f32.mrf.mxu0
    %95 = vdwg.mxu0
    %v96 = vmax.f32 %v91, 0.0
    %v97 = vpack.c.bf16 %v96, %v96
    %v98 = vld [vmem:[%s3] sm:$0xf]
    %v99 = vld [vmem:[%s3 + $0x4] sm:$0xf]
    %v100 = vld [vmem:[%s3 + $0x8] sm:$0xf]
    %v101 = vld [vmem:[%s3 + $0xc] sm:$0xf]
    %v102 = vld [vmem:[%s3 + $0x10] sm:$0xf]
    %v103 = vld [vmem:[%s3 + $0x14] sm:$0xf]
    %v104 = vld [vmem:[%s3 + $0x18] sm:$0xf]
    %v105 = vld [vmem:[%s3 + $0x1c] sm:$0xf]
    %v106 = vld [vmem:[%s4] sm:$0x1]
    %v108 = vlaneseq
    %v109 = vshrl.u32 %v108, 7
    %v110 = vsub.s32 0, %v109
    %v111 = vrot.slane %v106, %v110
    %v121 = vunpack.c.l.b16 %v98
    %v122 = vunpack.c.l.b16 %v99
    %v123 = vunpack.c.l.b16 %v100
    %v124 = vunpack.c.l.b16 %v101
    %v125 = vunpack.c.l.b16 %v102
    %v126 = vunpack.c.l.b16 %v103
    %v127 = vunpack.c.l.b16 %v104
    %v128 = vunpack.c.l.b16 %v105
    %v129 = vpack.c.b16 %v122, %v121
    %v130 = vpack.c.b16 %v124, %v123
    %v131 = vpack.c.b16 %v126, %v125
    %v132 = vpack.c.b16 %v128, %v127
    %vm137 = vcmask 523264
    %v139 = vsel %vm137, %v97, 0
    %141 = vmatprep.subr.bf16.mxu0 0
    %142 = vmatpush1.bf16.msra.mxu0 0
    %143 = vmatprep.subr.bf16.mxu0 0
    %144 = vmatpush1.bf16.msra.mxu0 0
    %145 = vmatprep.subr.bf16.mxu0 0
    %146 = vmatpush1.bf16.msra.mxu0 0
    %147 = vmatprep.subr.bf16.mxu0 0
    %148 = vmatpush1.bf16.msra.mxu0 0
    %149 = vmatprep.subr.bf16.mxu0 0
    %150 = vmatpush1.bf16.msra.mxu0 %v132
    %151 = vmatprep.subr.bf16.mxu0 0
    %152 = vmatpush1.bf16.msra.mxu0 %v131
    %153 = vmatprep.subr.bf16.mxu0 0
    %154 = vmatpush1.bf16.msra.mxu0 %v130
    %155 = vmatprep.subr.bf16.mxu0 0
    %156 = vmatpush1.bf16.msra.mxu0 %v129
    %157 = vmatprep.subr.bf16.mxu0 0
    %158 = vmatpush2.bf16.msra.mxu0 0
    %159 = vmatprep.subr.bf16.mxu0 0
    %160 = vmatpush2.bf16.msra.mxu0 0
    %161 = vmatprep.subr.bf16.mxu0 0
    %162 = vmatpush2.bf16.msra.mxu0 0
    %163 = vmatprep.subr.bf16.mxu0 0
    %164 = vmatpush2.bf16.msra.mxu0 0
    %165 = vmatprep.subr.bf16.mxu0 0
    %166 = vmatpush2.bf16.msra.mxu0 0
    %167 = vmatprep.subr.bf16.mxu0 0
    %168 = vmatpush2.bf16.msra.mxu0 0
    %169 = vmatprep.subr.bf16.mxu0 0
    %170 = vmatpush2.bf16.msra.mxu0 0
    %171 = vmatprep.subr.bf16.mxu0 0
    %172 = vmatpush2.bf16.msra.mxu0 0
    %173 = vmatprep.mubr.bf16.mxu0 0
    %174 = vmatmul.mubr.bf16.gmra.mxu0 %v139
    %v175 = vpop.f32.mrf.mxu0
    %v176 = vadd.f32 %v111, %v175
    %v177 = vpop.f32.mrf.mxu0
    %v178 = vpop.f32.mrf.mxu0
    %v179 = vpop.f32.mrf.mxu0
    %180 = vdwg.mxu0
    %v181 = vmax.f32 %v176, 0.0
    %v182 = vpack.c.bf16 %v181, %v181
    %v183 = vld [vmem:[%s5] sm:$0xf]
    %v184 = vld [vmem:[%s5 + $0x4] sm:$0xf]
    %v185 = vld [vmem:[%s5 + $0x8] sm:$0xf]
    %v186 = vld [vmem:[%s5 + $0xc] sm:$0xf]
    %v187 = vld [vmem:[%s6] sm:$0x1]
    %v189 = vlaneseq
    %v190 = vshrl.u32 %v189, 7
    %v191 = vsub.s32 0, %v190
    %v192 = vrot.slane %v187, %v191
    %v198 = vunpack.c.l.b16 %v183
    %v199 = vunpack.c.l.b16 %v184
    %v200 = vunpack.c.l.b16 %v185
    %v201 = vunpack.c.l.b16 %v186
    %v202 = vpack.c.b16 %v199, %v198
    %v203 = vpack.c.b16 %v201, %v200
    %v207 = vsel %vm52, %v182, 0
    %209 = vmatprep.subr.bf16.mxu0 0
    %210 = vmatpush1.bf16.msra.mxu0 0
    %211 = vmatprep.subr.bf16.mxu0 0
    %212 = vmatpush1.bf16.msra.mxu0 0
    %213 = vmatprep.subr.bf16.mxu0 0
    %214 = vmatpush1.bf16.msra.mxu0 0
    %215 = vmatprep.subr.bf16.mxu0 0
    %216 = vmatpush1.bf16.msra.mxu0 0
    %217 = vmatprep.subr.bf16.mxu0 0
    %218 = vmatpush1.bf16.msra.mxu0 0
    %219 = vmatprep.subr.bf16.mxu0 0
    %220 = vmatpush1.bf16.msra.mxu0 0
    %221 = vmatprep.subr.bf16.mxu0 0
    %222 = vmatpush1.bf16.msra.mxu0 %v203
    %223 = vmatprep.subr.bf16.mxu0 0
    %224 = vmatpush1.bf16.msra.mxu0 %v202
    %225 = vmatprep.subr.bf16.mxu0 0
    %226 = vmatpush2.bf16.msra.mxu0 0
    %227 = vmatprep.subr.bf16.mxu0 0
    %228 = vmatpush2.bf16.msra.mxu0 0
    %229 = vmatprep.subr.bf16.mxu0 0
    %230 = vmatpush2.bf16.msra.mxu0 0
    %231 = vmatprep.subr.bf16.mxu0 0
    %232 = vmatpush2.bf16.msra.mxu0 0
    %233 = vmatprep.subr.bf16.mxu0 0
    %234 = vmatpush2.bf16.msra.mxu0 0
    %235 = vmatprep.subr.bf16.mxu0 0
    %236 = vmatpush2.bf16.msra.mxu0 0
    %237 = vmatprep.subr.bf16.mxu0 0
    %238 = vmatpush2.bf16.msra.mxu0 0
    %239 = vmatprep.subr.bf16.mxu0 0
    %240 = vmatpush2.bf16.msra.mxu0 0
    %241 = vmatprep.mubr.bf16.mxu0 0
    %242 = vmatmul.mubr.bf16.gmra.mxu0 %v207
    %v243 = vpop.f32.mrf.mxu0
    %v244 = vadd.f32 %v192, %v243
    %v245 = vpop.f32.mrf.mxu0
    %v246 = vpop.f32.mrf.mxu0
    %v247 = vpop.f32.mrf.mxu0
    %248 = vdwg.mxu0
    %249 = vst [vmem:[#allocation2] sm:$0xff] %v244
    // Predicated region
    $region30: #{tpu_custom_call.1} parent=1 // pred_check
      _
    $region31: #{tpu_custom_call.1} parent=1 // pred_check_branch
      %251 = sbr.rel (0) target = $region33
    $region32: #{tpu_custom_call.1} parent=1 // pred_region
      %s253 = ssub.s32 128, 128
      %254 = vsyncadd [#allocation3], %s253
      %s256 = sshll.u32 [#allocation2], 4
      %s257 = int_to_ptr.vmem [resolvable:$true] %s256
      %259 = dma.vmem_to_hbm [thread:$0]  %s257, 128, %s7, [#allocation3]
    $region33: #{tpu_custom_call.1} parent=1 // pred_fallthru
      _
    // Predicated region
    $region34: #{tpu_custom_call.1} parent=1 // pred_check
      _
    $region35: #{tpu_custom_call.1} parent=1 // pred_check_branch
      %261 = sbr.rel (0) target = $region37
    $region36: #{tpu_custom_call.1} parent=1 // pred_region
      %262 = dma.done [#allocation3], 128
    $region37: #{tpu_custom_call.1} parent=1 // pred_fallthru
      _
    %263 = vsyncpa [#allocation3], 1

</llo_original>
